<compile_context>
chip_gen: v5e
topology: v5e:2x2
jax: 0.10.0
libtpu: 0.0.40
codegen_flags: <defaults>
</compile_context>

<pallas_src>
import functools

import jax
import jax.numpy as jnp
from jax.experimental import pallas as pl
from jax.experimental.pallas import tpu as pltpu

EPS = 1e-5


def _round_up(x: int, m: int) -> int:
    return ((x + m - 1) // m) * m


def cbn_kernel(x_ref, labels_ref, table_ref, gamma_ref, beta_ref, out_ref, *, eps):
    """One feature tile: x (B, TN), labels (B, 1), table (C, 2*TN) = [dG | dB]."""
    B = x_ref.shape[0]
    tn = out_ref.shape[1]
    n_classes = table_ref.shape[0]

    # ---- batch statistics (training mode), exact per column tile ----
    h = x_ref[...]                                            # (B, TN) f32
    mean = jnp.mean(h, axis=0, keepdims=True)                 # (1, TN)
    diff = h - mean
    # torch.var(dim=0) default is unbiased: divide by (B-1). For B == 1 this is
    # inf/nan at runtime, matching torch's behavior.
    var = jnp.sum(diff * diff, axis=0, keepdims=True) / jnp.float32(B - 1)
    x_norm = diff * jax.lax.rsqrt(var + eps)                  # (B, TN)

    # ---- fused conditional-scale/shift lookup: one one-hot MXU matmul ----
    labels = labels_ref[...]                                  # (B, 1) int32
    cls_iota = jax.lax.broadcasted_iota(jnp.int32, (B, n_classes), 1)
    onehot = (labels == cls_iota).astype(jnp.float32)         # (B, C)
    deltas = jnp.dot(onehot, table_ref[...],
                     preferred_element_type=jnp.float32)      # (B, 2*TN)
    d_gamma = deltas[:, :tn]                                  # 128-aligned slices
    d_beta = deltas[:, tn:]

    weight = gamma_ref[...] + d_gamma                         # (1,TN) + (B,TN)
    bias = beta_ref[...] + d_beta
    out_ref[...] = weight * x_norm + bias


def conditional_batch_norm(inps, labels, delta_gamma, delta_beta, gamma, beta,
                           *, eps=EPS, block_n=512):
    """inps (B, D) f32, labels (B,) int -> (B, D) f32 (training-mode CBN)."""
    B, D = inps.shape
    C = delta_gamma.shape[0]

    # Lane-dense tiling: TN multiple of 128, padded feature dim multiple of TN.
    tn = min(_round_up(block_n, 128), _round_up(D, 128))
    Dp = _round_up(D, tn)
    num_tiles = Dp // tn
    pad = Dp - D

    f32 = jnp.float32
    x_p = jnp.pad(inps.astype(f32), ((0, 0), (0, pad)))
    dg_p = jnp.pad(delta_gamma.astype(f32), ((0, 0), (0, pad)))
    db_p = jnp.pad(delta_beta.astype(f32), ((0, 0), (0, pad)))
    g_p = jnp.pad(gamma.reshape(1, D).astype(f32), ((0, 0), (0, pad)))
    b_p = jnp.pad(beta.reshape(1, D).astype(f32), ((0, 0), (0, pad)))

    # Fuse the two embedding tables: per feature tile j the block is [dG_j | dB_j],
    # so the kernel does a single (B,C) @ (C, 2*TN) lookup matmul per tile.
    table = jnp.concatenate(
        [dg_p.reshape(C, num_tiles, tn), db_p.reshape(C, num_tiles, tn)],
        axis=2,
    ).reshape(C, num_tiles * 2 * tn)

    labels2d = labels.reshape(B, 1).astype(jnp.int32)

    # Advisory cost estimate (lookup matmul + elementwise + rsqrt).
    cost = pl.CostEstimate(
        flops=2 * B * C * 2 * Dp + 10 * B * Dp,
        transcendentals=Dp,
        bytes_accessed=4 * (2 * B * Dp + C * 2 * Dp + 2 * Dp + B),
    )

    out_p = pl.pallas_call(
        functools.partial(cbn_kernel, eps=eps),
        out_shape=jax.ShapeDtypeStruct((B, Dp), jnp.float32),
        grid=(num_tiles,),
        in_specs=[
            pl.BlockSpec((B, tn), lambda j: (0, j)),        # inps column tile
            pl.BlockSpec((B, 1), lambda j: (0, 0)),         # labels (tiny, resident)
            pl.BlockSpec((C, 2 * tn), lambda j: (0, j)),    # fused [dG | dB] tile
            pl.BlockSpec((1, tn), lambda j: (0, j)),        # gamma tile
            pl.BlockSpec((1, tn), lambda j: (0, j)),        # beta tile
        ],
        out_specs=pl.BlockSpec((B, tn), lambda j: (0, j)),
        compiler_params=pltpu.CompilerParams(
            dimension_semantics=("parallel",),              # megacore on v7x
            vmem_limit_bytes=48 * 1024 * 1024,              # fits v7x's 64 MiB VMEM
        ),
        cost_estimate=cost,
    )(x_p, labels2d, table, g_p, b_p)

    return out_p[:, :D]


def cbn_ref(inps, labels, delta_gamma, delta_beta, gamma, beta, eps=EPS):
    """Pure-JAX reference mirroring the PyTorch forward (training mode)."""
    B = inps.shape[0]
    mean = jnp.mean(inps, axis=0, keepdims=True)
    var = jnp.sum((inps - mean) ** 2, axis=0, keepdims=True) / (B - 1)
    x = (inps - mean) / jnp.sqrt(var + eps)
    weight = gamma + delta_gamma[labels]
    bias = beta + delta_beta[labels]
    return weight * x + bias


if __name__ == "__main__":
    # Small shapes consistent with the module: inps (B, num_features), labels (B,)
    B, D, n_classes = 8, 64, 4

    key = jax.random.PRNGKey(0)
    kx, ky, kdg, kdb = jax.random.split(key, 4)

    inps = jax.random.normal(kx, (B, D), dtype=jnp.float32)
    labels = jax.random.randint(ky, (B,), 0, n_classes, dtype=jnp.int32)

    # reset_parameters(): delta_gamma=1, delta_beta=0, gamma=1, beta=0, plus a small
    # deterministic perturbation so the conditional path is actually exercised.
    delta_gamma = 1.0 + 0.1 * jax.random.normal(kdg, (n_classes, D), jnp.float32)
    delta_beta = 0.1 * jax.random.normal(kdb, (n_classes, D), jnp.float32)
    gamma = jnp.ones((1, D), jnp.float32)
    beta = jnp.zeros((1, D), jnp.float32)

    out = conditional_batch_norm(inps, labels, delta_gamma, delta_beta, gamma, beta)
    out = jax.block_until_ready(out)

    ref = cbn_ref(inps, labels, delta_gamma, delta_beta, gamma, beta)
    assert out.shape == (B, D)
    err = jnp.max(jnp.abs(out - ref))
    assert jnp.allclose(out, ref, atol=1e-4, rtol=1e-4), f"max abs err = {err}"

    print("KERNEL_OK")
</pallas_src>

<mosaic_0001>
module attributes {stable_mosaic.version = 11 : i64} {
  func.func @cbn_kernel(%arg0: i32, %arg1: memref<8x128xf32, #tpu.memory_space<vmem>>, %arg2: memref<8x1xi32, #tpu.memory_space<vmem>>, %arg3: memref<4x256xf32, #tpu.memory_space<vmem>>, %arg4: memref<1x128xf32, #tpu.memory_space<vmem>>, %arg5: memref<1x128xf32, #tpu.memory_space<vmem>>, %arg6: memref<8x128xf32, #tpu.memory_space<vmem>>) attributes {dimension_semantics = [#tpu.dimension_semantics<parallel>], iteration_bounds = array<i64: 1>, scalar_prefetch = 0 : i64, scratch_operands = 0 : i64, tpu.core_type = #tpu.core_type<tc>, window_params = [{transform_indices = @transform_0, window_bounds = array<i64: 8, 128>}, {pipeline_mode = #tpu.pipeline_mode<synchronous>, transform_indices = @transform_1, window_bounds = array<i64: 8, 1>}, {transform_indices = @transform_2, window_bounds = array<i64: 4, 256>}, {transform_indices = @transform_3, window_bounds = array<i64: 1, 128>}, {transform_indices = @transform_4, window_bounds = array<i64: 1, 128>}, {transform_indices = @transform_5, window_bounds = array<i64: 8, 128>}]} {
    %c0 = arith.constant 0 : index
    %c0_0 = arith.constant 0 : index
    %0 = vector.load %arg1[%c0, %c0_0] : memref<8x128xf32, #tpu.memory_space<vmem>>, vector<8x128xf32>
    %cst = arith.constant dense<0.000000e+00> : vector<128xf32>
    %1 = vector.multi_reduction <add>, %0, %cst [0] : vector<8x128xf32> to vector<128xf32>
    %2 = vector.shape_cast %1 : vector<128xf32> to vector<1x128xf32>
    %cst_1 = arith.constant 8.000000e+00 : f32
    %3 = vector.broadcast %cst_1 : f32 to vector<1x128xf32>
    %4 = arith.divf %2, %3 : vector<1x128xf32>
    %5 = vector.broadcast %4 : vector<1x128xf32> to vector<8x128xf32>
    %6 = arith.subf %0, %5 : vector<8x128xf32>
    %7 = arith.mulf %6, %6 : vector<8x128xf32>
    %cst_2 = arith.constant dense<0.000000e+00> : vector<128xf32>
    %8 = vector.multi_reduction <add>, %7, %cst_2 [0] : vector<8x128xf32> to vector<128xf32>
    %9 = vector.shape_cast %8 : vector<128xf32> to vector<1x128xf32>
    %cst_3 = arith.constant 7.000000e+00 : f32
    %10 = vector.broadcast %cst_3 : f32 to vector<1x128xf32>
    %11 = arith.divf %9, %10 : vector<1x128xf32>
    %cst_4 = arith.constant 9.99999974E-6 : f32
    %12 = vector.broadcast %cst_4 : f32 to vector<1x128xf32>
    %13 = arith.addf %11, %12 : vector<1x128xf32>
    %14 = math.rsqrt %13 : vector<1x128xf32>
    %15 = vector.broadcast %14 : vector<1x128xf32> to vector<8x128xf32>
    %16 = arith.mulf %6, %15 : vector<8x128xf32>
    %c0_5 = arith.constant 0 : index
    %c0_6 = arith.constant 0 : index
    %17 = vector.load %arg2[%c0_5, %c0_6] : memref<8x1xi32, #tpu.memory_space<vmem>>, vector<8x1xi32>
    %18 = tpu.iota {dimensions = array<i32: 1>} : vector<8x4xi32>
    %19 = vector.broadcast %17 : vector<8x1xi32> to vector<8x4xi32>
    %20 = arith.cmpi eq, %19, %18 : vector<8x4xi32>
    %21 = arith.extui %20 : vector<8x4xi1> to vector<8x4xi32>
    %22 = arith.sitofp %21 : vector<8x4xi32> to vector<8x4xf32>
    %c0_7 = arith.constant 0 : index
    %c0_8 = arith.constant 0 : index
    %23 = vector.load %arg3[%c0_7, %c0_8] : memref<4x256xf32, #tpu.memory_space<vmem>>, vector<4x256xf32>
    %cst_9 = arith.constant dense<0.000000e+00> : vector<8x256xf32>
    %24 = tpu.matmul %22, %23, %cst_9 {dimension_numbers = #tpu.dot_dimension_numbers<[1], [0], [0], [1], [0, 0, 1, 1], [], []>} : vector<8x4xf32>, vector<4x256xf32>, vector<8x256xf32> -> vector<8x256xf32>
    %25 = vector.extract_strided_slice %24 {offsets = [0, 0], sizes = [8, 128], strides = [1, 1]} : vector<8x256xf32> to vector<8x128xf32>
    %26 = vector.extract_strided_slice %24 {offsets = [0, 128], sizes = [8, 128], strides = [1, 1]} : vector<8x256xf32> to vector<8x128xf32>
    %c0_10 = arith.constant 0 : index
    %c0_11 = arith.constant 0 : index
    %27 = vector.load %arg4[%c0_10, %c0_11] : memref<1x128xf32, #tpu.memory_space<vmem>>, vector<1x128xf32>
    %28 = vector.broadcast %27 : vector<1x128xf32> to vector<8x128xf32>
    %29 = arith.addf %28, %25 : vector<8x128xf32>
    %c0_12 = arith.constant 0 : index
    %c0_13 = arith.constant 0 : index
    %30 = vector.load %arg5[%c0_12, %c0_13] : memref<1x128xf32, #tpu.memory_space<vmem>>, vector<1x128xf32>
    %31 = vector.broadcast %30 : vector<1x128xf32> to vector<8x128xf32>
    %32 = arith.addf %31, %26 : vector<8x128xf32>
    %33 = arith.mulf %29, %16 : vector<8x128xf32>
    %34 = arith.addf %33, %32 : vector<8x128xf32>
    %c0_14 = arith.constant 0 : index
    %c0_15 = arith.constant 0 : index
    %35 = vector.load %arg6[%c0_14, %c0_15] : memref<8x128xf32, #tpu.memory_space<vmem>>, vector<8x128xf32>
    tpu.vector_store %arg6[%c0_14, %c0_15], %34 {strides = array<i32>} : memref<8x128xf32, #tpu.memory_space<vmem>>, vector<8x128xf32>,
    return
  }
  func.func @transform_0(%arg0: i32) -> (i32, i32) {
    %c0_i32 = arith.constant 0 : i32
    %c0_i32_0 = arith.constant 0 : i32
    return %c0_i32, %arg0 : i32, i32
  }
  func.func @transform_1(%arg0: i32) -> (i32, i32) {
    %c0_i32 = arith.constant 0 : i32
    %c0_i32_0 = arith.constant 0 : i32
    %c0_i32_1 = arith.constant 0 : i32
    return %c0_i32, %c0_i32_0 : i32, i32
  }
  func.func @transform_2(%arg0: i32) -> (i32, i32) {
    %c0_i32 = arith.constant 0 : i32
    %c0_i32_0 = arith.constant 0 : i32
    return %c0_i32, %arg0 : i32, i32
  }
  func.func @transform_3(%arg0: i32) -> (i32, i32) {
    %c0_i32 = arith.constant 0 : i32
    %c0_i32_0 = arith.constant 0 : i32
    return %c0_i32, %arg0 : i32, i32
  }
  func.func @transform_4(%arg0: i32) -> (i32, i32) {
    %c0_i32 = arith.constant 0 : i32
    %c0_i32_0 = arith.constant 0 : i32
    return %c0_i32, %arg0 : i32, i32
  }
  func.func @transform_5(%arg0: i32) -> (i32, i32) {
    %c0_i32 = arith.constant 0 : i32
    %c0_i32_0 = arith.constant 0 : i32
    return %c0_i32, %arg0 : i32, i32
  }
}

</mosaic_0001>

<llo_original>
// kernel: tpu_custom_call.1
$region0: #{tpu_custom_call.1}
  #allocation0 [shape = 'u32[]', space=smem, size = 0x4, offset = 0x4, fixed_abs, tag = 'smem constant byte address 0x4 - core index']
  #allocation1 [shape = 'u32[72,128]{1,0:T(1,128)}', space=vmem, size = 0x9000, scoped, tag = 'internal scratch']
  %s0 = inlined_call_operand.vmem [shape: f32[8,128], index: 0, kind: input, shape index: {}]
  %s1 = inlined_call_operand.vmem [shape: s32[8,1], index: 1, kind: input, shape index: {}]
  %s2 = inlined_call_operand.hbm [shape: f32[4,256], index: 2, kind: input, shape index: {}]
  %s3 = inlined_call_operand.vmem [shape: f32[1,128], index: 3, kind: input, shape index: {}]
  %s4 = inlined_call_operand.vmem [shape: f32[1,128], index: 4, kind: input, shape index: {}]
  %s5 = inlined_call_operand.hbm [shape: f32[8,128], index: 5, kind: output, shape index: {}]
  %s6 = sld [smem:[#allocation0]]
  $region34: #{tpu_custom_call.1} parent=0
    _
  %s8 = ssub.s32 1, %s6
  %s9 = scalar_select 0, %s8, %s6
  $region1: #{tpu_custom_call.1} parent=0
    #allocation2 [shape = 'u8[4096]{0}', space=vmem, size = 0x1000, scoped, tag = 'input window, operand 2, single buffered']
    #allocation3 [shape = 's32[1]{0}', space=sflag, size = 0x4, scoped, tag = 'scoped memory for tpu_custom_call.1']
    #allocation4 [shape = 's32[1]{0}', space=sflag, size = 0x4, scoped, tag = 'scoped memory for tpu_custom_call.1']
    #allocation5 [shape = 'u8[4096]{0}', space=vmem, size = 0x1000, scoped, tag = 'output window, operand 0, single buffered']
    %10 = vsyncpa [#allocation3], 0
    %11 = vsyncpa [#allocation4], 0
    // Predicated region
    $region2: #{tpu_custom_call.1} parent=1 // pred_check
      _
    $region3: #{tpu_custom_call.1} parent=1 // pred_check_branch
      %13 = sbr.rel (0) target = $region5
    $region4: #{tpu_custom_call.1} parent=1 // pred_region
      _
    $region5: #{tpu_custom_call.1} parent=1 // pred_fallthru
      _
    // Predicated region
    $region6: #{tpu_custom_call.1} parent=1 // pred_check
      _
    $region7: #{tpu_custom_call.1} parent=1 // pred_check_branch
      %15 = sbr.rel (0) target = $region9
    $region8: #{tpu_custom_call.1} parent=1 // pred_region
      _
    $region9: #{tpu_custom_call.1} parent=1 // pred_fallthru
      _
    // Predicated region
    $region10: #{tpu_custom_call.1} parent=1 // pred_check
      _
    $region11: #{tpu_custom_call.1} parent=1 // pred_check_branch
      %17 = sbr.rel (0) target = $region13
    $region12: #{tpu_custom_call.1} parent=1 // pred_region
      %19 = vsyncadd [#allocation3], 0
      %s21 = sshll.u32 %s2, 4
      %s22 = int_to_ptr.hbm [resolvable:$true] %s21
      %s23 = sshll.u32 [#allocation2], 4
      %s24 = int_to_ptr.vmem [resolvable:$true] %s23
      %26 = dma.hbm_to_vmem [thread:$0]  %s22, 128, %s24, [#allocation3]
    $region13: #{tpu_custom_call.1} parent=1 // pred_fallthru
      _
    // Predicated region
    $region14: #{tpu_custom_call.1} parent=1 // pred_check
      _
    $region15: #{tpu_custom_call.1} parent=1 // pred_check_branch
      %28 = sbr.rel (0) target = $region17
    $region16: #{tpu_custom_call.1} parent=1 // pred_region
      _
    $region17: #{tpu_custom_call.1} parent=1 // pred_fallthru
      _
    // Predicated region
    $region18: #{tpu_custom_call.1} parent=1 // pred_check
      _
    $region19: #{tpu_custom_call.1} parent=1 // pred_check_branch
      %30 = sbr.rel (0) target = $region21
    $region20: #{tpu_custom_call.1} parent=1 // pred_region
      _
    $region21: #{tpu_custom_call.1} parent=1 // pred_fallthru
      _
    // Predicated region
    $region22: #{tpu_custom_call.1} parent=1 // pred_check
      _
    $region23: #{tpu_custom_call.1} parent=1 // pred_check_branch
      %32 = sbr.rel (0) target = $region25
    $region24: #{tpu_custom_call.1} parent=1 // pred_region
      %34 = dma.done [#allocation3], 128
    $region25: #{tpu_custom_call.1} parent=1 // pred_fallthru
      _
    %v35 = vld [vmem:[%s0] sm:$0xff]
    %v36 = vrot.slane %v35, 4
    %v37 = vadd.f32 %v35, %v36
    %v38 = vrot.slane %v37, 2
    %v39 = vadd.f32 %v37, %v38
    %v40 = vrot.slane %v39, 1
    %v41 = vadd.f32 %v39, %v40
    %v42 = vrcp.pop 8.0
    %v43 = vmul.f32 8.0, %v42
    %v44 = vsub.f32 1.0, %v43
    %v45 = vmul.f32 %v42, %v44
    %v46 = vadd.f32 %v42, %v45
    %vm47 = vweird.f32 %v42
    %v48 = vsel %vm47, %v42, %v46
    %v49 = vmul.f32 %v41, %v48
    %v50 = vsub.f32 %v35, %v49
    %v51 = vmul.f32 %v50, %v50
    %v52 = vrot.slane %v51, 4
    %v53 = vadd.f32 %v51, %v52
    %v54 = vrot.slane %v53, 2
    %v55 = vadd.f32 %v53, %v54
    %v56 = vrot.slane %v55, 1
    %v57 = vadd.f32 %v55, %v56
    %v58 = vrcp.pop 7.0
    %v59 = vmul.f32 7.0, %v58
    %v60 = vsub.f32 1.0, %v59
    %v61 = vmul.f32 %v58, %v60
    %v62 = vadd.f32 %v58, %v61
    %vm63 = vweird.f32 %v58
    %v64 = vsel %vm63, %v58, %v62
    %v65 = vmul.f32 %v57, %v64
    %v66 = vadd.f32 %v65, 1e-05
    %v67 = vrsqrt.pop %v66
    %v68 = vmul.f32 %v67, %v66
    %v69 = vmul.f32 %v68, %v67
    %v70 = vmul.f32 0.5, %v69
    %v71 = vsub.f32 1.5, %v70
    %v72 = vmul.f32 %v67, %v71
    %vm73 = vweird.f32 %v66
    %vm74 = vweird.f32 %v67
    %vm75 = vmor %vm73, %vm74
    %v76 = vsel %vm75, %v67, %v72
    %v77 = vmul.f32 %v50, %v76
    %v78 = vld [vmem:[%s1] sm:$0xff]
    %v79 = vlaneseq
    %v80 = vand.u32 %v79, 127
    %81 = vset.pattern.permute.xlu0 0
    %82 = vperm.xlu0 %81, %v78
    %v83 = vpop.permute.xlu0 %82
    %vm84 = vcmp.eq.s32.totalorder %v83, %v80
    %v85 = vsel %vm84, 1, 0
    %v86 = vcvt.s32.f32 %v85
    %v87 = vld [vmem:[#allocation2] sm:$0xff]
    %89 = vst [vmem:[#allocation1] ss:$2 sm:$0xff] %v87
    %v90 = vld.sshfl [vmem:[#allocation1] sm:$0xff pattern:$0x75316420]
    %v91 = vld.sshfl [vmem:[#allocation1 + $0x8] sm:$0xff pattern:$0x75316420]
    %vm92 = vcmask 31744
    %v94 = vsel %vm92, %v86, 0
    %vm96 = vcmask 1043456
    %v97 = vsel %vm96, %v90, 0
    %v99 = vsel %vm96, %v91, 0
    %101 = vmatpush.msra.mxu0 0.0
    %102 = vmatpush.msra.mxu0 0.0
    %103 = vmatpush.msra.mxu0 0.0
    %104 = vmatpush.msra.mxu0 0.0
    %105 = vmatpush.msra.mxu0 0.0
    %106 = vmatpush.msra.mxu0 0.0
    %107 = vmatpush.msra.mxu0 0.0
    %108 = vmatpush.msra.mxu0 0.0
    %109 = vmatpush.msra.mxu0 0.0
    %110 = vmatpush.msra.mxu0 0.0
    %111 = vmatpush.msra.mxu0 0.0
    %112 = vmatpush.msra.mxu0 0.0
    %113 = vmatpush.msra.mxu0 0.0
    %114 = vmatpush.msra.mxu0 0.0
    %115 = vmatpush.msra.mxu0 0.0
    %116 = vmatpush.msra.mxu0 %v97
    %117 = vmatmul.f32.gmra.mxu0 %v94
    %v118 = vpop.f32.mrf.mxu0
    %v119 = vadd.f32 0.0, %v118
    %120 = vdwg.mxu0
    %121 = vmatpush.msra.mxu0 0.0
    %122 = vmatpush.msra.mxu0 0.0
    %123 = vmatpush.msra.mxu0 0.0
    %124 = vmatpush.msra.mxu0 0.0
    %125 = vmatpush.msra.mxu0 0.0
    %126 = vmatpush.msra.mxu0 0.0
    %127 = vmatpush.msra.mxu0 0.0
    %128 = vmatpush.msra.mxu0 0.0
    %129 = vmatpush.msra.mxu0 0.0
    %130 = vmatpush.msra.mxu0 0.0
    %131 = vmatpush.msra.mxu0 0.0
    %132 = vmatpush.msra.mxu0 0.0
    %133 = vmatpush.msra.mxu0 0.0
    %134 = vmatpush.msra.mxu0 0.0
    %135 = vmatpush.msra.mxu0 0.0
    %136 = vmatpush.msra.mxu0 %v99
    %137 = vmatmul.f32.gmra.mxu0 %v94
    %v138 = vpop.f32.mrf.mxu0
    %v139 = vadd.f32 0.0, %v138
    %140 = vdwg.mxu0
    %v141 = vld [vmem:[%s3] sm:$0x1]
    %v143 = vperm.slane %v141, 0
    %v145 = vadd.f32 %v143, %v119
    %v146 = vld [vmem:[%s4] sm:$0x1]
    %v148 = vperm.slane %v146, 0
    %v150 = vadd.f32 %v148, %v139
    %v151 = vmul.f32 %v145, %v77
    %v152 = vadd.f32 %v151, %v150
    %153 = vst [vmem:[#allocation5] sm:$0xff] %v152
    // Predicated region
    $region26: #{tpu_custom_call.1} parent=1 // pred_check
      _
    $region27: #{tpu_custom_call.1} parent=1 // pred_check_branch
      %155 = sbr.rel (0) target = $region29
    $region28: #{tpu_custom_call.1} parent=1 // pred_region
      %157 = vsyncadd [#allocation4], 0
      %s159 = sshll.u32 [#allocation5], 4
      %s160 = int_to_ptr.vmem [resolvable:$true] %s159
      %s161 = sshll.u32 %s5, 4
      %s162 = int_to_ptr.hbm [resolvable:$true] %s161
      %164 = dma.vmem_to_hbm [thread:$0]  %s160, 128, %s162, [#allocation4]
    $region29: #{tpu_custom_call.1} parent=1 // pred_fallthru
      _
    // Predicated region
    $region30: #{tpu_custom_call.1} parent=1 // pred_check
      _
    $region31: #{tpu_custom_call.1} parent=1 // pred_check_branch
      %166 = sbr.rel (0) target = $region33
    $region32: #{tpu_custom_call.1} parent=1 // pred_region
      %168 = dma.done [#allocation4], 128
    $region33: #{tpu_custom_call.1} parent=1 // pred_fallthru
      _
    %169 = vsyncpa [#allocation3], 1
    %170 = vsyncpa [#allocation4], 1

</llo_original>
